<compile_context>
chip_gen: v7x
topology: tpu7x:2x2x1
jax: 0.10.0
libtpu: 0.0.40
codegen_flags: <defaults>
</compile_context>

<pallas_src>
import functools
import math

import jax
import jax.numpy as jnp
from jax.experimental import pallas as pl
from jax.experimental.pallas import tpu as pltpu


def _pact_log_quant_kernel(x_ref, q_ref, n_ref, *, alpha, inv_alpha, ln_base,
                           inv_ln_base, time_step, base_is_two):
    """Elementwise PACT + log quantization on one (tile_rows, 128) block.

    q = where(round(log_base(clamp(x,0,alpha)/alpha)) > -T,
              base**round(...), 0) * alpha
    n = clamp(x, 0, alpha) / alpha
    """
    x = x_ref[...].astype(jnp.float32)          # compute in f32 regardless of input dtype
    y = jnp.clip(x, jnp.float32(0.0), jnp.float32(alpha))
    normed = y * jnp.float32(inv_alpha)

    # No `normed == 0` select: log(0) = -inf flows through round / pow and the
    # final `rnd > -T` select to q == 0 for any positive base (saves a
    # vcmp + vselect per vreg vs the literal reference formulation).
    log_value = jnp.log(normed) * jnp.float32(inv_ln_base)
    rnd = jnp.round(log_value)                   # half-to-even, matches torch.round

    if base_is_two:
        pw = jnp.exp2(rnd)                       # single EUP op, exact for integer rnd
    else:
        pw = jnp.exp(rnd * jnp.float32(ln_base))
    q = jnp.where(rnd > jnp.float32(-time_step), pw, jnp.float32(0.0)) * jnp.float32(alpha)

    q_ref[...] = q.astype(q_ref.dtype)
    n_ref[...] = normed.astype(n_ref.dtype)


def pact_with_log_quantize(x, alpha=5.0, base=2.0, time_step=16):
    """Forward of PACT_with_log_quantize. Returns (qinput, normed_ofm)."""
    orig_shape = x.shape
    dtype = x.dtype
    lane = 128

    # Sublane multiple required for this dtype's packing (f32:8, bf16:16, int8:32).
    itemsize = jnp.dtype(dtype).itemsize
    sub = max(8, 32 // max(1, itemsize))

    n = x.size
    rows_needed = pl.cdiv(n, lane)
    # Only round rows up to the dtype's sublane multiple; the grid uses cdiv so
    # the last (possibly ragged) block is masked by Pallas instead of the
    # wrapper padding to a multiple of tile_rows.
    rows = ((rows_needed + sub - 1) // sub) * sub
    padded = rows * lane

    # ~2 MiB per stream per step (12 MiB double-buffered across x/q/normed);
    # safe on every generation with the explicit 48 MiB scoped-VMEM limit.
    max_tile_rows = 4096 * max(1, 4 // itemsize)

    if rows <= 2 * max_tile_rows:
        # Split into >= 2 blocks whenever possible so the "parallel" grid axis
        # shards across both TensorCores on v7x megacore.
        tile_rows = max(sub, ((rows + 1) // 2 + sub - 1) // sub * sub)
    else:
        tile_rows = max_tile_rows

    xf = x.reshape(-1)
    if padded != n:
        # TODO(synk): rare ragged-lane tail (n % (128*sub) != 0) still pays a
        # wrapper-side pad + output slice; an in-kernel masked-store tail
        # (scalar-prefetched n + pltpu.store mask) would avoid the extra HBM pass.
        xf = jnp.pad(xf, (0, padded - n))
    x2d = xf.reshape(rows, lane)

    base_f = float(base)
    alpha_f = float(alpha)
    kernel = functools.partial(
        _pact_log_quant_kernel,
        alpha=alpha_f,
        inv_alpha=1.0 / alpha_f,
        ln_base=math.log(base_f),
        inv_ln_base=1.0 / math.log(base_f),
        time_step=float(time_step),
        base_is_two=(base_f == 2.0),
    )

    grid = (pl.cdiv(rows, tile_rows),)
    q2d, n2d = pl.pallas_call(
        kernel,
        out_shape=(
            jax.ShapeDtypeStruct((rows, lane), dtype),
            jax.ShapeDtypeStruct((rows, lane), dtype),
        ),
        grid=grid,
        in_specs=[
            pl.BlockSpec((tile_rows, lane), lambda i: (i, 0)),   # x tile (orig dtype)
        ],
        out_specs=(
            pl.BlockSpec((tile_rows, lane), lambda i: (i, 0)),   # qinput tile
            pl.BlockSpec((tile_rows, lane), lambda i: (i, 0)),   # normed_ofm tile
        ),
        compiler_params=pltpu.CompilerParams(
            dimension_semantics=("parallel",),
            vmem_limit_bytes=48 * 1024 * 1024,
        ),
    )(x2d)

    if padded != n:
        qinput = q2d.reshape(-1)[:n].reshape(orig_shape)
        normed = n2d.reshape(-1)[:n].reshape(orig_shape)
    else:
        qinput = q2d.reshape(orig_shape)
        normed = n2d.reshape(orig_shape)
    return qinput, normed


def _reference(x, alpha=5.0, base=2.0, time_step=16):
    x = x.astype(jnp.float32)
    y = jnp.clip(x, 0.0, alpha)
    normed = y / alpha
    log_value = jnp.where(normed == 0.0, jnp.float32(-time_step),
                          jnp.log(normed) / jnp.log(jnp.float32(base)))
    rnd = jnp.round(log_value)
    q = jnp.where(rnd > -time_step, jnp.float32(base) ** rnd, 0.0) * alpha
    return q, normed


if __name__ == "__main__":
    key = jax.random.PRNGKey(0)
    # NCHW input, like a conv activation map.
    x = jax.random.normal(key, (2, 4, 16, 16), dtype=jnp.float32) * 3.0

    qinput, normed = pact_with_log_quantize(x, alpha=5.0, base=2.0, time_step=16)
    qinput, normed = jax.block_until_ready((qinput, normed))

    q_ref, n_ref = _reference(x, alpha=5.0, base=2.0, time_step=16)
    assert qinput.shape == x.shape and normed.shape == x.shape
    assert jnp.allclose(qinput, q_ref, atol=1e-5, rtol=1e-5)
    assert jnp.allclose(normed, n_ref, atol=1e-6, rtol=1e-6)

    print("KERNEL_OK")
</pallas_src>

<mosaic_0001>
module attributes {stable_mosaic.version = 11 : i64} {
  func.func @_pact_log_quant_kernel(%arg0: i32, %arg1: memref<8x128xf32, #tpu.memory_space<vmem>>, %arg2: memref<8x128xf32, #tpu.memory_space<vmem>>, %arg3: memref<8x128xf32, #tpu.memory_space<vmem>>) attributes {dimension_semantics = [#tpu.dimension_semantics<parallel>], iteration_bounds = array<i64: 2>, scalar_prefetch = 0 : i64, scratch_operands = 0 : i64, tpu.core_type = #tpu.core_type<tc>, window_params = [{transform_indices = @transform_0, window_bounds = array<i64: 8, 128>}, {transform_indices = @transform_1, window_bounds = array<i64: 8, 128>}, {transform_indices = @transform_2, window_bounds = array<i64: 8, 128>}]} {
    %c0 = arith.constant 0 : index
    %c0_0 = arith.constant 0 : index
    %0 = vector.load %arg1[%c0, %c0_0] : memref<8x128xf32, #tpu.memory_space<vmem>>, vector<8x128xf32>
    %cst = arith.constant 0.000000e+00 : f32
    %cst_1 = arith.constant 5.000000e+00 : f32
    %1 = vector.broadcast %cst : f32 to vector<8x128xf32>
    %2 = arith.maximumf %1, %0 : vector<8x128xf32>
    %3 = vector.broadcast %cst_1 : f32 to vector<8x128xf32>
    %4 = arith.minimumf %3, %2 : vector<8x128xf32>
    %cst_2 = arith.constant 2.000000e-01 : f32
    %5 = vector.broadcast %cst_2 : f32 to vector<8x128xf32>
    %6 = arith.mulf %4, %5 : vector<8x128xf32>
    %7 = math.log %6 : vector<8x128xf32>
    %cst_3 = arith.constant 1.44269502 : f32
    %8 = vector.broadcast %cst_3 : f32 to vector<8x128xf32>
    %9 = arith.mulf %7, %8 : vector<8x128xf32>
    %10 = math.roundeven %9 : vector<8x128xf32>
    %11 = math.exp2 %10 : vector<8x128xf32>
    %cst_4 = arith.constant -1.600000e+01 : f32
    %12 = vector.broadcast %cst_4 : f32 to vector<8x128xf32>
    %13 = arith.cmpf ogt, %10, %12 : vector<8x128xf32>
    %cst_5 = arith.constant 0.000000e+00 : f32
    %14 = vector.broadcast %cst_5 : f32 to vector<8x128xf32>
    %15 = arith.select %13, %11, %14 : vector<8x128xi1>, vector<8x128xf32>
    %cst_6 = arith.constant 5.000000e+00 : f32
    %16 = vector.broadcast %cst_6 : f32 to vector<8x128xf32>
    %17 = arith.mulf %15, %16 : vector<8x128xf32>
    %c0_7 = arith.constant 0 : index
    %c0_8 = arith.constant 0 : index
    %18 = vector.load %arg2[%c0_7, %c0_8] : memref<8x128xf32, #tpu.memory_space<vmem>>, vector<8x128xf32>
    tpu.vector_store %arg2[%c0_7, %c0_8], %17 {strides = array<i32>} : memref<8x128xf32, #tpu.memory_space<vmem>>, vector<8x128xf32>,
    %c0_9 = arith.constant 0 : index
    %c0_10 = arith.constant 0 : index
    %19 = vector.load %arg3[%c0_9, %c0_10] : memref<8x128xf32, #tpu.memory_space<vmem>>, vector<8x128xf32>
    tpu.vector_store %arg3[%c0_9, %c0_10], %6 {strides = array<i32>} : memref<8x128xf32, #tpu.memory_space<vmem>>, vector<8x128xf32>,
    return
  }
  func.func @transform_0(%arg0: i32) -> (i32, i32) {
    %c0_i32 = arith.constant 0 : i32
    %c0_i32_0 = arith.constant 0 : i32
    return %arg0, %c0_i32 : i32, i32
  }
  func.func @transform_1(%arg0: i32) -> (i32, i32) {
    %c0_i32 = arith.constant 0 : i32
    %c0_i32_0 = arith.constant 0 : i32
    return %arg0, %c0_i32 : i32, i32
  }
  func.func @transform_2(%arg0: i32) -> (i32, i32) {
    %c0_i32 = arith.constant 0 : i32
    %c0_i32_0 = arith.constant 0 : i32
    return %arg0, %c0_i32 : i32, i32
  }
}

</mosaic_0001>

<llo_original>
// kernel: tpu_custom_call.1
$region0: #{tpu_custom_call.1}
  #allocation0 [shape = 'u32[]', space=smem, size = 0x4, offset = 0x4, fixed_abs, tag = 'smem constant byte address 0x4 - core index']
  #allocation1 [shape = 'u32[144,128]{1,0:T(1,128)}', space=vmem, size = 0x12000, scoped, tag = 'internal scratch']
  %s0 = inlined_call_operand.hbm [shape: f32[16,128], index: 0, kind: input, shape index: {}]
  %s1 = inlined_call_operand.hbm [shape: f32[16,128], index: 1, kind: output, shape index: {0}]
  %s2 = inlined_call_operand.hbm [shape: f32[16,128], index: 2, kind: output, shape index: {1}]
  %3 = xla_tuple %s1, %s2
  %s4 = sld [smem:[#allocation0]]
  $region49: #{tpu_custom_call.1} parent=0
    _
  %s6 = ssub.s32 1, %s4
  %s7 = scalar_select 0, %s6, %s4
  $region1: #{tpu_custom_call.1} parent=0
    #allocation2 [shape = 'u8[8192]{0}', space=vmem, size = 0x2000, scoped, tag = 'input window, operand 0']
    #allocation3 [shape = 's32[2]{0}', space=sflag, size = 0x8, scoped, tag = 'scoped memory for tpu_custom_call.1']
    #allocation4 [shape = 's32[2]{0}', space=sflag, size = 0x8, scoped, tag = 'scoped memory for tpu_custom_call.1']
    #allocation5 [shape = 'u8[8192]{0}', space=vmem, size = 0x2000, scoped, tag = 'output window, operand 0']
    #allocation6 [shape = 'u8[8192]{0}', space=vmem, size = 0x2000, scoped, tag = 'output window, operand 1']
    #allocation7 [shape = 's32[2]{0}', space=sflag, size = 0x8, scoped, tag = 'scoped memory for tpu_custom_call.1']
    %8 = vsyncpa [#allocation3], 0
    %s9 = scalar_lea.sflag [#allocation3], 1
    %10 = vsyncpa %s9, 0
    %11 = vsyncpa [#allocation4], 0
    %s12 = scalar_lea.sflag [#allocation4], 1
    %13 = vsyncpa %s12, 0
    %14 = vsyncpa [#allocation7], 0
    %s15 = scalar_lea.sflag [#allocation7], 1
    %16 = vsyncpa %s15, 0
    loop: start=0, step=1, limit=4
    $region2: #{tpu_custom_call.1} parent=1 // loop_pre_header
      _
    $region3: #{tpu_custom_call.1} parent=1 // loop_header
      %s18 = sphi 0, %s22
      %p19 = scmp.ge.s32.totalorder %s18, 4
      %s28 = sphi 0, %s30
      %s31 = sphi 0, %s28
      %s32 = sphi 0, %s31
      %s48 = sphi 0, %s32
      %s54 = sphi 0, %s56
      %s57 = sphi 0, %s54
      %s58 = sphi 0, %s57
      %s74 = sphi 0, %s58
      %s80 = sphi 0, %s82
      %s83 = sphi 0, %s80
      %s84 = sphi 0, %s83
      %s100 = sphi 0, %s84
    $region4: #{tpu_custom_call.1} parent=1 // loop_header_branch
      %21 = sbr.rel (%p19) target = $region8
    $region5: #{tpu_custom_call.1} parent=1 // loop_body
      %s23 = ssub.s32 %s18, 1
      %s24 = ssub.s32 %s18, 2
      %s25 = sadd.s32 %s18, 1
      %s26 = ssub.s32 %s18, %s25
      %p27 = scmp.eq.s32.totalorder %s26, 0
      %s29 = sadd.s32 %s28, 1
      %s30 = scalar_select %p27, %s28, %s29
      %p33 = pneg %p27
      %p34 = scmp.eq.s32.totalorder %s18, 1
      %p35 = por %p33, %p34
      %p36 = scmp.ne.s32.totalorder %s28, %s31
      %p37 = scmp.eq.s32.totalorder %s18, 0
      %p38 = por %p36, %p37
      %p39 = scmp.ne.s32.totalorder %s28, %s31
      %p40 = scmp.eq.s32.totalorder %s23, 1
      %p41 = por %p39, %p40
      %p42 = scmp.ne.s32.totalorder %s31, %s32
      %p43 = scmp.eq.s32.totalorder %s23, 0
      %p44 = por %p42, %p43
      %p45 = scmp.ne.s32.totalorder %s31, %s32
      %p46 = scmp.eq.s32.totalorder %s24, 1
      %p47 = por %p45, %p46
      %p49 = scmp.ne.s32.totalorder %s32, %s48
      %p50 = scmp.eq.s32.totalorder %s24, 0
      %p51 = por %p49, %p50
      %s52 = ssub.s32 %s18, %s25
      %p53 = scmp.eq.s32.totalorder %s52, 0
      %s55 = sadd.s32 %s54, 1
      %s56 = scalar_select %p53, %s54, %s55
      %p59 = pneg %p53
      %p60 = scmp.eq.s32.totalorder %s18, 1
      %p61 = por %p59, %p60
      %p62 = scmp.ne.s32.totalorder %s54, %s57
      %p63 = scmp.eq.s32.totalorder %s18, 0
      %p64 = por %p62, %p63
      %p65 = scmp.ne.s32.totalorder %s54, %s57
      %p66 = scmp.eq.s32.totalorder %s23, 1
      %p67 = por %p65, %p66
      %p68 = scmp.ne.s32.totalorder %s57, %s58
      %p69 = scmp.eq.s32.totalorder %s23, 0
      %p70 = por %p68, %p69
      %p71 = scmp.ne.s32.totalorder %s57, %s58
      %p72 = scmp.eq.s32.totalorder %s24, 1
      %p73 = por %p71, %p72
      %p75 = scmp.ne.s32.totalorder %s58, %s74
      %p76 = scmp.eq.s32.totalorder %s24, 0
      %p77 = por %p75, %p76
      %s78 = ssub.s32 %s18, %s25
      %p79 = scmp.eq.s32.totalorder %s78, 0
      %s81 = sadd.s32 %s80, 1
      %s82 = scalar_select %p79, %s80, %s81
      %p85 = pneg %p79
      %p86 = scmp.eq.s32.totalorder %s18, 1
      %p87 = por %p85, %p86
      %p88 = scmp.ne.s32.totalorder %s80, %s83
      %p89 = scmp.eq.s32.totalorder %s18, 0
      %p90 = por %p88, %p89
      %p91 = scmp.ne.s32.totalorder %s80, %s83
      %p92 = scmp.eq.s32.totalorder %s23, 1
      %p93 = por %p91, %p92
      %p94 = scmp.ne.s32.totalorder %s83, %s84
      %p95 = scmp.eq.s32.totalorder %s23, 0
      %p96 = por %p94, %p95
      %p97 = scmp.ne.s32.totalorder %s83, %s84
      %p98 = scmp.eq.s32.totalorder %s24, 1
      %p99 = por %p97, %p98
      %p101 = scmp.ne.s32.totalorder %s84, %s100
      %p102 = scmp.eq.s32.totalorder %s24, 0
      %p103 = por %p101, %p102
      %p104 = scmp.le.s32.totalorder 1, %s18
      %p105 = scmp.lt.s32.totalorder %s18, 3
      %p106 = pnand %p104, %p105
      %p107 = pneg %p106
      // Predicated region
      $region9: #{tpu_custom_call.1} parent=5 // pred_check
        _
      $region10: #{tpu_custom_call.1} parent=5 // pred_check_branch
        %109 = sbr.rel (%p106) target = $region12
      $region11: #{tpu_custom_call.1} parent=5 // pred_region
        %s110 = ssub.s32 %s18, 1
      $region12: #{tpu_custom_call.1} parent=5 // pred_fallthru
        _
      %p111 = scmp.lt.s32.totalorder %s18, 2
      // Predicated region
      $region13: #{tpu_custom_call.1} parent=5 // pred_check
        %p112 = pneg %p111
      $region14: #{tpu_custom_call.1} parent=5 // pred_check_branch
        %114 = sbr.rel (%p112) target = $region16
      $region15: #{tpu_custom_call.1} parent=5 // pred_region
        // Predicated region
        $region17: #{tpu_custom_call.1} parent=15 // pred_check
          %p115 = pneg %p38
        $region18: #{tpu_custom_call.1} parent=15 // pred_check_branch
          %117 = sbr.rel (%p115) target = $region20
        $region19: #{tpu_custom_call.1} parent=15 // pred_region
          %s118 = sand.u32 %s28, 1
          %s119 = scalar_lea.sflag [#allocation3], %s118
          %s120 = sand.u32 %s28, 1
          %s121 = smul.addr %s120, 8
          %s122 = scalar_lea.vmem [#allocation2], %s121
          %s124 = ssub.s32 128, 128
          %125 = vsyncadd %s119, %s124
          %s126 = smul.addr %s18, 128
          %s127 = scalar_lea.hbm %s0, %s126
          %s129 = sshll.u32 %s122, 4
          %s130 = int_to_ptr.vmem [resolvable:$true] %s129
          %132 = dma.hbm_to_vmem [thread:$0]  %s127, 128, %s130, %s119
        $region20: #{tpu_custom_call.1} parent=15 // pred_fallthru
          _
      $region16: #{tpu_custom_call.1} parent=5 // pred_fallthru
        _
      %p133 = scmp.le.s32.totalorder 1, %s18
      %p134 = scmp.lt.s32.totalorder %s18, 3
      %p135 = pnand %p133, %p134
      %p136 = pneg %p135
      // Predicated region
      $region21: #{tpu_custom_call.1} parent=5 // pred_check
        _
      $region22: #{tpu_custom_call.1} parent=5 // pred_check_branch
        %138 = sbr.rel (%p135) target = $region24
      $region23: #{tpu_custom_call.1} parent=5 // pred_region
        %s139 = ssub.s32 %s18, 1
        %s140 = sand.u32 %s31, 1
        %s141 = scalar_lea.sflag [#allocation3], %s140
        %s142 = sand.u32 %s31, 1
        %s143 = smul.addr %s142, 8
        %s144 = scalar_lea.vmem [#allocation2], %s143
        // Predicated region
        $region25: #{tpu_custom_call.1} parent=23 // pred_check
          %p145 = pneg %p44
        $region26: #{tpu_custom_call.1} parent=23 // pred_check_branch
          %147 = sbr.rel (%p145) target = $region28
        $region27: #{tpu_custom_call.1} parent=23 // pred_region
          %148 = dma.done %s141, 128
        $region28: #{tpu_custom_call.1} parent=23 // pred_fallthru
          _
        %s149 = sand.u32 %s31, 1
        %s150 = scalar_lea.sflag [#allocation3], %s149
        %s151 = sand.u32 %s31, 1
        %s152 = smul.addr %s151, 8
        %s153 = scalar_lea.vmem [#allocation2], %s152
        %p154 = pneg %p44
        %p155 = pneg %p41
        %p156 = pneg %p70
        %p157 = pneg %p67
        %s158 = sand.u32 %s57, 1
        %s159 = scalar_lea.sflag [#allocation4], %s158
        %s160 = sand.u32 %s57, 1
        %s161 = smul.addr %s160, 8
        %s162 = scalar_lea.vmem [#allocation5], %s161
        %p163 = pneg %p96
        %p164 = pneg %p93
        %s165 = sand.u32 %s83, 1
        %s166 = scalar_lea.sflag [#allocation7], %s165
        %s167 = sand.u32 %s83, 1
        %s168 = smul.addr %s167, 8
        %s169 = scalar_lea.vmem [#allocation6], %s168
        %v170 = vld [vmem:[%s144] sm:$0xff]
        %v171 = vmax.f32 %v170, 0.0
        %v172 = vmin.f32 %v171, 5.0
        %v173 = vmul.f32 %v172, 0.2
        %v174 = vlog2.pop %v173
        %v175 = vmul.f32 %v174, 0.6931472
        %v176 = vmul.f32 %v175, 1.442695
        %v177 = vround.ne.pseudo %v176
        %v178 = vpow.pop %v177
        %vm179 = vcmp.gt.f32.partialorder %v177, -16.0
        %v180 = vsel %vm179, %v178, 0.0
        %v181 = vmul.f32 %v180, 5.0
        %182 = vst [vmem:[%s162] sm:$0xff] %v181
        %183 = vst [vmem:[%s169] sm:$0xff] %v173
        %s184 = sand.u32 %s57, 1
        %s185 = scalar_lea.sflag [#allocation4], %s184
        %s186 = sand.u32 %s57, 1
        %s187 = smul.addr %s186, 8
        %s188 = scalar_lea.vmem [#allocation5], %s187
        %s189 = sand.u32 %s83, 1
        %s190 = scalar_lea.sflag [#allocation7], %s189
        %s191 = sand.u32 %s83, 1
        %s192 = smul.addr %s191, 8
        %s193 = scalar_lea.vmem [#allocation6], %s192
        // Predicated region
        $region29: #{tpu_custom_call.1} parent=23 // pred_check
          %p194 = pneg %p67
        $region30: #{tpu_custom_call.1} parent=23 // pred_check_branch
          %196 = sbr.rel (%p194) target = $region32
        $region31: #{tpu_custom_call.1} parent=23 // pred_region
          %s198 = ssub.s32 128, 128
          %199 = vsyncadd %s185, %s198
          %s200 = smul.addr %s23, 128
          %s201 = scalar_lea.hbm %s1, %s200
          %s203 = sshll.u32 %s188, 4
          %s204 = int_to_ptr.vmem [resolvable:$true] %s203
          %206 = dma.vmem_to_hbm [thread:$0]  %s204, 128, %s201, %s185
        $region32: #{tpu_custom_call.1} parent=23 // pred_fallthru
          _
        // Predicated region
        $region33: #{tpu_custom_call.1} parent=23 // pred_check
          %p207 = pneg %p93
        $region34: #{tpu_custom_call.1} parent=23 // pred_check_branch
          %209 = sbr.rel (%p207) target = $region36
        $region35: #{tpu_custom_call.1} parent=23 // pred_region
          %s211 = ssub.s32 128, 128
          %212 = vsyncadd %s190, %s211
          %s213 = smul.addr %s23, 128
          %s214 = scalar_lea.hbm %s2, %s213
          %s216 = sshll.u32 %s193, 4
          %s217 = int_to_ptr.vmem [resolvable:$true] %s216
          %219 = dma.vmem_to_hbm [thread:$0]  %s217, 128, %s214, %s190
        $region36: #{tpu_custom_call.1} parent=23 // pred_fallthru
          _
      $region24: #{tpu_custom_call.1} parent=5 // pred_fallthru
        _
      %p220 = scmp.le.s32.totalorder 2, %s18
      // Predicated region
      $region37: #{tpu_custom_call.1} parent=5 // pred_check
        %p221 = pneg %p220
      $region38: #{tpu_custom_call.1} parent=5 // pred_check_branch
        %223 = sbr.rel (%p221) target = $region40
      $region39: #{tpu_custom_call.1} parent=5 // pred_region
        %s224 = ssub.s32 %s18, 2
        // Predicated region
        $region41: #{tpu_custom_call.1} parent=39 // pred_check
          %p225 = pneg %p73
        $region42: #{tpu_custom_call.1} parent=39 // pred_check_branch
          %227 = sbr.rel (%p225) target = $region44
        $region43: #{tpu_custom_call.1} parent=39 // pred_region
          %s228 = sand.u32 %s58, 1
          %s229 = scalar_lea.sflag [#allocation4], %s228
          %s230 = sand.u32 %s58, 1
          %s231 = smul.addr %s230, 8
          %s232 = scalar_lea.vmem [#allocation5], %s231
          %233 = dma.done %s229, 128
        $region44: #{tpu_custom_call.1} parent=39 // pred_fallthru
          _
        // Predicated region
        $region45: #{tpu_custom_call.1} parent=39 // pred_check
          %p234 = pneg %p99
        $region46: #{tpu_custom_call.1} parent=39 // pred_check_branch
          %236 = sbr.rel (%p234) target = $region48
        $region47: #{tpu_custom_call.1} parent=39 // pred_region
          %s237 = sand.u32 %s84, 1
          %s238 = scalar_lea.sflag [#allocation7], %s237
          %s239 = sand.u32 %s84, 1
          %s240 = smul.addr %s239, 8
          %s241 = scalar_lea.vmem [#allocation6], %s240
          %242 = dma.done %s238, 128
        $region48: #{tpu_custom_call.1} parent=39 // pred_fallthru
          _
      $region40: #{tpu_custom_call.1} parent=5 // pred_fallthru
        _
    $region6: #{tpu_custom_call.1} parent=1 // loop_footer
      %s22 = sadd.s32 1, %s18
    $region7: #{tpu_custom_call.1} parent=1 // loop_footer_branch
      %17 = sbr.rel target = $region3
    $region8: #{tpu_custom_call.1} parent=1 // loop_exit
      _
    %243 = vsyncpa [#allocation3], 1
    %s244 = scalar_lea.sflag [#allocation3], 1
    %245 = vsyncpa %s244, 1
    %246 = vsyncpa [#allocation4], 1
    %s247 = scalar_lea.sflag [#allocation4], 1
    %248 = vsyncpa %s247, 1
    %249 = vsyncpa [#allocation7], 1
    %s250 = scalar_lea.sflag [#allocation7], 1
    %251 = vsyncpa %s250, 1

</llo_original>
